<compile_context>
chip_gen: v7x
topology: tpu7x:2x2x1
jax: 0.10.0
libtpu: 0.0.40
codegen_flags: <defaults>
</compile_context>

<pallas_src>
import functools

import jax
import jax.numpy as jnp
from jax.experimental import pallas as pl
from jax.experimental.pallas import tpu as pltpu

_LANE = 128          # lane width (last dim) for dense vregs / unmasked stores
_SUBLANE = 8         # f32 sublane granularity (second-to-last dim)
_PARAM_ROW_ALIGN = 32  # keep every packed segment row-aligned for f32/bf16 tilings


def _round_up(n, m):
    return ((n + m - 1) // m) * m


def _mlp_kernel(x_ref, p_ref, o_ref, *, layer_meta, compute_dtype):
    """One batch tile through the whole (padded) MLP.

    p_ref is the packed parameter slab [total_rows, Wmax]:
      layer i weight: rows [rw, rw+in_pad),  cols [0, out_pad)
      layer i bias  : row   rb,              cols [0, out_pad)
    layer_meta = ((rw, rb, in_pad, out_pad), ...)  -- static, baked at trace time.
    """
    h = x_ref[...].astype(jnp.float32)
    n = len(layer_meta)
    for i, (rw, rb, in_pad, out_pad) in enumerate(layer_meta):
        w = p_ref[rw:rw + in_pad, 0:out_pad]                     # stored compute_dtype
        b = p_ref[rb:rb + 1, 0:out_pad].astype(jnp.float32)      # (1, out_pad) broadcast
        # MXU matmul (bf16 or f32 operands) with f32 accumulation; epilogue in f32.
        h = jnp.dot(h.astype(compute_dtype), w,
                    preferred_element_type=jnp.float32) + b
        if i < n - 1:
            h = jnp.maximum(h, 0.0)          # ReLU on hidden layers
        else:
            h = jnp.tanh(h) * 2.0            # final tanh * 2
    o_ref[...] = h.astype(o_ref.dtype)


def pack_params(weights, biases, param_dtype=jnp.float32):
    """Zero-pad each layer to 128-lane multiples and pack all params into one slab."""
    dims = [weights[0].shape[0]] + [w.shape[1] for w in weights]
    pdims = [_round_up(d, _LANE) for d in dims]
    wmax = max(pdims[1:])

    pieces = []
    layer_meta = []
    r = 0
    for i, (w, b) in enumerate(zip(weights, biases)):
        in_pad, out_pad = pdims[i], pdims[i + 1]
        wp = jnp.zeros((in_pad, wmax), param_dtype)
        wp = wp.at[:w.shape[0], :w.shape[1]].set(w.astype(param_dtype))
        bp = jnp.zeros((_PARAM_ROW_ALIGN, wmax), param_dtype)
        bp = bp.at[0, :b.shape[0]].set(b.astype(param_dtype))
        pieces.extend([wp, bp])
        layer_meta.append((r, r + in_pad, in_pad, out_pad))
        r += in_pad + _PARAM_ROW_ALIGN
    slab = jnp.concatenate(pieces, axis=0)
    return slab, tuple(layer_meta), pdims


def linear_policy_forward(x, weights, biases, *, batch_tile=None,
                          param_dtype=jnp.float32):
    """Fused MLP forward (Linear -> ReLU ... -> Linear -> tanh*2) in one pallas_call.

    x:       [B, net_arch[0]]  float32
    weights: list of [in_i, out_i] float32
    biases:  list of [out_i]       float32
    returns: [B, net_arch[-1]]     float32
    """
    B, in_dim = x.shape
    out_dim = weights[-1].shape[1]

    slab, layer_meta, pdims = pack_params(weights, biases, param_dtype)
    in_pad, out_pad_last = pdims[0], pdims[-1]

    # ---- batch tiling -------------------------------------------------------
    B_sub = _round_up(B, _SUBLANE)
    if batch_tile is None:
        batch_tile = min(512, B_sub)                  # fill the MXU, amortize per-step cost
        # v7x megacore: prefer >=2 grid steps so both TensorCores get work,
        # as long as each tile still has >=128 rows.
        if B_sub // batch_tile < 2 and B_sub >= 2 * _LANE:
            batch_tile = _round_up(B_sub // 2, _SUBLANE)
    batch_tile = _round_up(min(batch_tile, B_sub), _SUBLANE)

    # Crude VMEM budget (v7x: 64 MiB physical, 32 MiB default scoped limit):
    # double-buffered x/out tiles + live f32 intermediate + double-buffered param slab.
    def _vmem_bytes(bt):
        act = 2 * bt * in_pad * 4 + 2 * bt * out_pad_last * 4 + bt * max(pdims) * 4
        return act + 2 * slab.size * slab.dtype.itemsize
    while batch_tile > _SUBLANE and _vmem_bytes(batch_tile) > 24 * 1024 * 1024:
        batch_tile = _round_up(batch_tile // 2, _SUBLANE)

    grid_m = -(-B_sub // batch_tile)
    B_pad = grid_m * batch_tile

    # Zero-pad rows (batch) and lanes (features); padded lanes stay zero through the net
    # because padded weight rows/cols and bias lanes are zero.
    x_p = jnp.zeros((B_pad, in_pad), jnp.float32).at[:B, :in_dim].set(
        x.astype(jnp.float32))

    kernel = functools.partial(_mlp_kernel, layer_meta=layer_meta,
                               compute_dtype=param_dtype)

    out_p = pl.pallas_call(
        kernel,
        out_shape=jax.ShapeDtypeStruct((B_pad, out_pad_last), jnp.float32),
        grid=(grid_m,),
        in_specs=[
            # activations: one lane-dense (batch_tile, in_pad) tile per grid step
            pl.BlockSpec((batch_tile, in_pad), lambda i: (i, 0)),
            # all parameters: single packed slab; constant block index => DMA'd once
            # and kept resident across the grid (only one input instead of 2L tiny ones).
            pl.BlockSpec(slab.shape, lambda i: (0, 0)),
        ],
        # lane-dense output (multiple of 128) => unmasked stores; sliced below.
        out_specs=pl.BlockSpec((batch_tile, out_pad_last), lambda i: (i, 0)),
        compiler_params=pltpu.CompilerParams(
            dimension_semantics=("parallel",),   # batch axis shards across TCs (v7x)
        ),
    )(x_p, slab)

    return out_p[:B, :out_dim]


def init_linear_params(key, net_arch):
    """Deterministic nn.Linear-style init: U(-1/sqrt(fan_in), 1/sqrt(fan_in))."""
    weights, biases = [], []
    for a, b in zip(net_arch[:-1], net_arch[1:]):
        key, kw, kb = jax.random.split(key, 3)
        bound = 1.0 / jnp.sqrt(jnp.float32(a))
        weights.append(jax.random.uniform(kw, (a, b), jnp.float32, -bound, bound))
        biases.append(jax.random.uniform(kb, (b,), jnp.float32, -bound, bound))
    return weights, biases


def reference_forward(x, weights, biases):
    h = x.astype(jnp.float32)
    for i, (w, b) in enumerate(zip(weights, biases)):
        h = h @ w + b
        if i < len(weights) - 1:
            h = jnp.maximum(h, 0.0)
    return jnp.tanh(h) * 2.0


if __name__ == "__main__":
    net_arch = [32, 64, 64, 8]   # LinearPolicy(net_arch)

    key = jax.random.PRNGKey(0)
    key, kx = jax.random.split(key)
    weights, biases = init_linear_params(key, net_arch)

    # Small case (batch=8), f32 params — exact match to the reference.
    x_small = jax.random.normal(kx, (8, net_arch[0]), jnp.float32)
    out = jax.block_until_ready(linear_policy_forward(x_small, weights, biases))
    ref = reference_forward(x_small, weights, biases)
    assert out.shape == (8, net_arch[-1])
    assert jnp.allclose(out, ref, atol=1e-5, rtol=1e-5), "mismatch vs reference (small)"

    # Larger batch exercises real tiling: grid=2 (megacore-friendly), padded rows/lanes.
    key, kx2 = jax.random.split(key)
    x_big = jax.random.normal(kx2, (300, net_arch[0]), jnp.float32)
    out_big = jax.block_until_ready(linear_policy_forward(x_big, weights, biases))
    ref_big = reference_forward(x_big, weights, biases)
    assert out_big.shape == (300, net_arch[-1])
    assert jnp.allclose(out_big, ref_big, atol=1e-5, rtol=1e-5), "mismatch vs reference (big)"

    # bf16 MXU operands (f32 accumulation + f32 epilogue) — v6e/v7x fast path.
    out_bf16 = jax.block_until_ready(
        linear_policy_forward(x_big, weights, biases, param_dtype=jnp.bfloat16))
    assert out_bf16.shape == (300, net_arch[-1])
    assert float(jnp.max(jnp.abs(out_bf16 - ref_big))) < 0.2, "bf16 path diverged"

    # TODO(synk): `act()` uses torch.distributions.Normal sampling (host-side RNG glue
    # around the forward); only the forward hot path is implemented here.
    print("KERNEL_OK")
</pallas_src>

<mosaic_0001>
module attributes {stable_mosaic.version = 11 : i64} {
  func.func @_mlp_kernel(%arg0: i32, %arg1: memref<8x128xf32, #tpu.memory_space<vmem>>, %arg2: memref<480x128xf32, #tpu.memory_space<vmem>>, %arg3: memref<8x128xf32, #tpu.memory_space<vmem>>) attributes {dimension_semantics = [#tpu.dimension_semantics<parallel>], iteration_bounds = array<i64: 1>, scalar_prefetch = 0 : i64, scratch_operands = 0 : i64, tpu.core_type = #tpu.core_type<tc>, window_params = [{transform_indices = @transform_0, window_bounds = array<i64: 8, 128>}, {pipeline_mode = #tpu.pipeline_mode<synchronous>, transform_indices = @transform_1, window_bounds = array<i64: 480, 128>}, {transform_indices = @transform_2, window_bounds = array<i64: 8, 128>}]} {
    %c0 = arith.constant 0 : index
    %c0_0 = arith.constant 0 : index
    %0 = vector.load %arg1[%c0, %c0_0] : memref<8x128xf32, #tpu.memory_space<vmem>>, vector<8x128xf32>
    %c0_1 = arith.constant 0 : index
    %c0_2 = arith.constant 0 : index
    %1 = vector.load %arg2[%c0_1, %c0_2] : memref<480x128xf32, #tpu.memory_space<vmem>>, vector<128x128xf32>
    %c128 = arith.constant 128 : index
    %c0_3 = arith.constant 0 : index
    %2 = vector.load %arg2[%c128, %c0_3] : memref<480x128xf32, #tpu.memory_space<vmem>>, vector<1x128xf32>
    %cst = arith.constant dense<0.000000e+00> : vector<8x128xf32>
    %3 = tpu.matmul %0, %1, %cst {dimension_numbers = #tpu.dot_dimension_numbers<[1], [0], [0], [1], [0, 0, 1, 1], [], []>} : vector<8x128xf32>, vector<128x128xf32>, vector<8x128xf32> -> vector<8x128xf32>
    %4 = vector.broadcast %2 : vector<1x128xf32> to vector<8x128xf32>
    %5 = arith.addf %3, %4 : vector<8x128xf32>
    %cst_4 = arith.constant 0.000000e+00 : f32
    %6 = vector.broadcast %cst_4 : f32 to vector<8x128xf32>
    %7 = arith.maximumf %5, %6 : vector<8x128xf32>
    %c160 = arith.constant 160 : index
    %c0_5 = arith.constant 0 : index
    %8 = vector.load %arg2[%c160, %c0_5] : memref<480x128xf32, #tpu.memory_space<vmem>>, vector<128x128xf32>
    %c288 = arith.constant 288 : index
    %c0_6 = arith.constant 0 : index
    %9 = vector.load %arg2[%c288, %c0_6] : memref<480x128xf32, #tpu.memory_space<vmem>>, vector<1x128xf32>
    %cst_7 = arith.constant dense<0.000000e+00> : vector<8x128xf32>
    %10 = tpu.matmul %7, %8, %cst_7 {dimension_numbers = #tpu.dot_dimension_numbers<[1], [0], [0], [1], [0, 0, 1, 1], [], []>} : vector<8x128xf32>, vector<128x128xf32>, vector<8x128xf32> -> vector<8x128xf32>
    %11 = vector.broadcast %9 : vector<1x128xf32> to vector<8x128xf32>
    %12 = arith.addf %10, %11 : vector<8x128xf32>
    %cst_8 = arith.constant 0.000000e+00 : f32
    %13 = vector.broadcast %cst_8 : f32 to vector<8x128xf32>
    %14 = arith.maximumf %12, %13 : vector<8x128xf32>
    %c320 = arith.constant 320 : index
    %c0_9 = arith.constant 0 : index
    %15 = vector.load %arg2[%c320, %c0_9] : memref<480x128xf32, #tpu.memory_space<vmem>>, vector<128x128xf32>
    %c448 = arith.constant 448 : index
    %c0_10 = arith.constant 0 : index
    %16 = vector.load %arg2[%c448, %c0_10] : memref<480x128xf32, #tpu.memory_space<vmem>>, vector<1x128xf32>
    %cst_11 = arith.constant dense<0.000000e+00> : vector<8x128xf32>
    %17 = tpu.matmul %14, %15, %cst_11 {dimension_numbers = #tpu.dot_dimension_numbers<[1], [0], [0], [1], [0, 0, 1, 1], [], []>} : vector<8x128xf32>, vector<128x128xf32>, vector<8x128xf32> -> vector<8x128xf32>
    %18 = vector.broadcast %16 : vector<1x128xf32> to vector<8x128xf32>
    %19 = arith.addf %17, %18 : vector<8x128xf32>
    %20 = math.tanh %19 : vector<8x128xf32>
    %cst_12 = arith.constant 2.000000e+00 : f32
    %21 = vector.broadcast %cst_12 : f32 to vector<8x128xf32>
    %22 = arith.mulf %20, %21 : vector<8x128xf32>
    %c0_13 = arith.constant 0 : index
    %c0_14 = arith.constant 0 : index
    %23 = vector.load %arg3[%c0_13, %c0_14] : memref<8x128xf32, #tpu.memory_space<vmem>>, vector<8x128xf32>
    tpu.vector_store %arg3[%c0_13, %c0_14], %22 {strides = array<i32>} : memref<8x128xf32, #tpu.memory_space<vmem>>, vector<8x128xf32>,
    return
  }
  func.func @transform_0(%arg0: i32) -> (i32, i32) {
    %c0_i32 = arith.constant 0 : i32
    %c0_i32_0 = arith.constant 0 : i32
    return %arg0, %c0_i32 : i32, i32
  }
  func.func @transform_1(%arg0: i32) -> (i32, i32) {
    %c0_i32 = arith.constant 0 : i32
    %c0_i32_0 = arith.constant 0 : i32
    %c0_i32_1 = arith.constant 0 : i32
    return %c0_i32, %c0_i32_0 : i32, i32
  }
  func.func @transform_2(%arg0: i32) -> (i32, i32) {
    %c0_i32 = arith.constant 0 : i32
    %c0_i32_0 = arith.constant 0 : i32
    return %arg0, %c0_i32 : i32, i32
  }
}

</mosaic_0001>

<llo_original>
// kernel: tpu_custom_call.1
$region0: #{tpu_custom_call.1}
  #allocation0 [shape = 'u32[]', space=smem, size = 0x4, offset = 0x4, fixed_abs, tag = 'smem constant byte address 0x4 - core index']
  #allocation1 [shape = 'u32[144,128]{1,0:T(1,128)}', space=vmem, size = 0x12000, scoped, tag = 'internal scratch']
  %s0 = inlined_call_operand.hbm [shape: f32[8,128], index: 0, kind: input, shape index: {}]
  %s1 = inlined_call_operand.hbm [shape: f32[480,128], index: 1, kind: input, shape index: {}]
  %s2 = inlined_call_operand.hbm [shape: f32[8,128], index: 2, kind: output, shape index: {}]
  %s3 = sld [smem:[#allocation0]]
  $region26: #{tpu_custom_call.1} parent=0
    _
  %s5 = ssub.s32 1, %s3
  %s6 = scalar_select 0, %s5, %s3
  $region1: #{tpu_custom_call.1} parent=0
    #allocation2 [shape = 'u8[4096]{0}', space=vmem, size = 0x1000, scoped, tag = 'input window, operand 0, single buffered']
    #allocation3 [shape = 's32[1]{0}', space=sflag, size = 0x4, scoped, tag = 'scoped memory for tpu_custom_call.1']
    #allocation4 [shape = 's32[1]{0}', space=sflag, size = 0x4, scoped, tag = 'scoped memory for tpu_custom_call.1']
    #allocation5 [shape = 'u8[245760]{0}', space=vmem, size = 0x3c000, scoped, tag = 'input window, operand 1, single buffered']
    #allocation6 [shape = 's32[1]{0}', space=sflag, size = 0x4, scoped, tag = 'scoped memory for tpu_custom_call.1']
    #allocation7 [shape = 'u8[4096]{0}', space=vmem, size = 0x1000, scoped, tag = 'output window, operand 0, single buffered']
    %7 = vsyncpa [#allocation3], 0
    %8 = vsyncpa [#allocation6], 0
    %9 = vsyncpa [#allocation4], 0
    // Predicated region
    $region2: #{tpu_custom_call.1} parent=1 // pred_check
      _
    $region3: #{tpu_custom_call.1} parent=1 // pred_check_branch
      %11 = sbr.rel (0) target = $region5
    $region4: #{tpu_custom_call.1} parent=1 // pred_region
      %s13 = ssub.s32 128, 128
      %14 = vsyncadd [#allocation3], %s13
      %s16 = sshll.u32 [#allocation2], 4
      %s17 = int_to_ptr.vmem [resolvable:$true] %s16
      %19 = dma.hbm_to_vmem [thread:$0]  %s0, 128, %s17, [#allocation3]
    $region5: #{tpu_custom_call.1} parent=1 // pred_fallthru
      _
    // Predicated region
    $region6: #{tpu_custom_call.1} parent=1 // pred_check
      _
    $region7: #{tpu_custom_call.1} parent=1 // pred_check_branch
      %21 = sbr.rel (0) target = $region9
    $region8: #{tpu_custom_call.1} parent=1 // pred_region
      %s23 = ssub.s32 7680, 7680
      %24 = vsyncadd [#allocation6], %s23
      %s25 = sshll.u32 [#allocation5], 4
      %s26 = int_to_ptr.vmem [resolvable:$true] %s25
      %31 = dma.hbm_to_vmem [thread:$0]  %s1, 7680, %s26, [#allocation6], 128, 128, 8
    $region9: #{tpu_custom_call.1} parent=1 // pred_fallthru
      _
    // Predicated region
    $region10: #{tpu_custom_call.1} parent=1 // pred_check
      _
    $region11: #{tpu_custom_call.1} parent=1 // pred_check_branch
      %33 = sbr.rel (0) target = $region13
    $region12: #{tpu_custom_call.1} parent=1 // pred_region
      %34 = dma.done [#allocation3], 128
    $region13: #{tpu_custom_call.1} parent=1 // pred_fallthru
      _
    // Predicated region
    $region14: #{tpu_custom_call.1} parent=1 // pred_check
      _
    $region15: #{tpu_custom_call.1} parent=1 // pred_check_branch
      %36 = sbr.rel (0) target = $region17
    $region16: #{tpu_custom_call.1} parent=1 // pred_region
      %37 = dma.done [#allocation6], 7680
    $region17: #{tpu_custom_call.1} parent=1 // pred_fallthru
      _
    %v38 = vld [vmem:[#allocation2] sm:$0xff]
    %v39 = vld [vmem:[#allocation5] sm:$0xff]
    %v40 = vld [vmem:[#allocation5 + $0x8] sm:$0xff]
    %v41 = vld [vmem:[#allocation5 + $0x10] sm:$0xff]
    %v42 = vld [vmem:[#allocation5 + $0x18] sm:$0xff]
    %v43 = vld [vmem:[#allocation5 + $0x20] sm:$0xff]
    %v44 = vld [vmem:[#allocation5 + $0x28] sm:$0xff]
    %v45 = vld [vmem:[#allocation5 + $0x30] sm:$0xff]
    %v46 = vld [vmem:[#allocation5 + $0x38] sm:$0xff]
    %v47 = vld [vmem:[#allocation5 + $0x40] sm:$0xff]
    %v48 = vld [vmem:[#allocation5 + $0x48] sm:$0xff]
    %v49 = vld [vmem:[#allocation5 + $0x50] sm:$0xff]
    %v50 = vld [vmem:[#allocation5 + $0x58] sm:$0xff]
    %v51 = vld [vmem:[#allocation5 + $0x60] sm:$0xff]
    %v52 = vld [vmem:[#allocation5 + $0x68] sm:$0xff]
    %v53 = vld [vmem:[#allocation5 + $0x70] sm:$0xff]
    %v54 = vld [vmem:[#allocation5 + $0x78] sm:$0xff]
    %v55 = vld [vmem:[#allocation5 + $0x80] sm:$0x1]
    %v56 = vlaneseq
    %v57 = vshrl.u32 %v56, 7
    %v58 = vsub.s32 0, %v57
    %v59 = vrot.slane %v55, %v58
    %60 = vmatprep.subr.mxu0 0.0
    %61 = vmatpush1.msra.mxu0 %v39
    %62 = vmatprep.subr.mxu0 0.0
    %63 = vmatpush1.msra.mxu0 %v40
    %64 = vmatprep.subr.mxu0 0.0
    %65 = vmatpush1.msra.mxu0 %v41
    %66 = vmatprep.subr.mxu0 0.0
    %67 = vmatpush1.msra.mxu0 %v42
    %68 = vmatprep.subr.mxu0 0.0
    %69 = vmatpush1.msra.mxu0 %v43
    %70 = vmatprep.subr.mxu0 0.0
    %71 = vmatpush1.msra.mxu0 %v44
    %72 = vmatprep.subr.mxu0 0.0
    %73 = vmatpush1.msra.mxu0 %v45
    %74 = vmatprep.subr.mxu0 0.0
    %75 = vmatpush1.msra.mxu0 %v46
    %76 = vmatprep.subr.mxu0 0.0
    %77 = vmatpush1.msra.mxu0 %v47
    %78 = vmatprep.subr.mxu0 0.0
    %79 = vmatpush1.msra.mxu0 %v48
    %80 = vmatprep.subr.mxu0 0.0
    %81 = vmatpush1.msra.mxu0 %v49
    %82 = vmatprep.subr.mxu0 0.0
    %83 = vmatpush1.msra.mxu0 %v50
    %84 = vmatprep.subr.mxu0 0.0
    %85 = vmatpush1.msra.mxu0 %v51
    %86 = vmatprep.subr.mxu0 0.0
    %87 = vmatpush1.msra.mxu0 %v52
    %88 = vmatprep.subr.mxu0 0.0
    %89 = vmatpush1.msra.mxu0 %v53
    %90 = vmatprep.subr.mxu0 0.0
    %91 = vmatpush1.msra.mxu0 %v54
    %92 = vmatprep.subr.mxu0 0.0
    %93 = vmatpush1.msra.mxu0 0.0
    %94 = vmatprep.subr.mxu0 0.0
    %95 = vmatpush1.msra.mxu0 0.0
    %96 = vmatprep.subr.mxu0 0.0
    %97 = vmatpush1.msra.mxu0 0.0
    %98 = vmatprep.subr.mxu0 0.0
    %99 = vmatpush1.msra.mxu0 0.0
    %100 = vmatprep.subr.mxu0 0.0
    %101 = vmatpush1.msra.mxu0 0.0
    %102 = vmatprep.subr.mxu0 0.0
    %103 = vmatpush1.msra.mxu0 0.0
    %104 = vmatprep.subr.mxu0 0.0
    %105 = vmatpush1.msra.mxu0 0.0
    %106 = vmatprep.subr.mxu0 0.0
    %107 = vmatpush1.msra.mxu0 0.0
    %108 = vmatprep.subr.mxu0 0.0
    %109 = vmatpush1.msra.mxu0 0.0
    %110 = vmatprep.subr.mxu0 0.0
    %111 = vmatpush1.msra.mxu0 0.0
    %112 = vmatprep.subr.mxu0 0.0
    %113 = vmatpush1.msra.mxu0 0.0
    %114 = vmatprep.subr.mxu0 0.0
    %115 = vmatpush1.msra.mxu0 0.0
    %116 = vmatprep.subr.mxu0 0.0
    %117 = vmatpush1.msra.mxu0 0.0
    %118 = vmatprep.subr.mxu0 0.0
    %119 = vmatpush1.msra.mxu0 0.0
    %120 = vmatprep.subr.mxu0 0.0
    %121 = vmatpush1.msra.mxu0 0.0
    %122 = vmatprep.subr.mxu0 0.0
    %123 = vmatpush1.msra.mxu0 0.0
    %124 = vmatprep.mubr.f32.mxu0 0.0
    %125 = vmatmul.mubr.f32.gmra.mrb[0].mxu0 %v38
    %v126 = vpop.f32.mrb[0].mxu0
    %v127 = vadd.f32 %v59, %v126
    %v128 = vpop.f32.mrb[0].mxu0
    %129 = vdwg.mxu0
    %v130 = vmax.f32 %v127, 0.0
    %v131 = vld [vmem:[#allocation5 + $0xa0] sm:$0xff]
    %v132 = vld [vmem:[#allocation5 + $0xa8] sm:$0xff]
    %v133 = vld [vmem:[#allocation5 + $0xb0] sm:$0xff]
    %v134 = vld [vmem:[#allocation5 + $0xb8] sm:$0xff]
    %v135 = vld [vmem:[#allocation5 + $0xc0] sm:$0xff]
    %v136 = vld [vmem:[#allocation5 + $0xc8] sm:$0xff]
    %v137 = vld [vmem:[#allocation5 + $0xd0] sm:$0xff]
    %v138 = vld [vmem:[#allocation5 + $0xd8] sm:$0xff]
    %v139 = vld [vmem:[#allocation5 + $0xe0] sm:$0xff]
    %v140 = vld [vmem:[#allocation5 + $0xe8] sm:$0xff]
    %v141 = vld [vmem:[#allocation5 + $0xf0] sm:$0xff]
    %v142 = vld [vmem:[#allocation5 + $0xf8] sm:$0xff]
    %v143 = vld [vmem:[#allocation5 + $0x100] sm:$0xff]
    %v144 = vld [vmem:[#allocation5 + $0x108] sm:$0xff]
    %v145 = vld [vmem:[#allocation5 + $0x110] sm:$0xff]
    %v146 = vld [vmem:[#allocation5 + $0x118] sm:$0xff]
    %v147 = vld [vmem:[#allocation5 + $0x120] sm:$0x1]
    %v148 = vlaneseq
    %v149 = vshrl.u32 %v148, 7
    %v150 = vsub.s32 0, %v149
    %v151 = vrot.slane %v147, %v150
    %152 = vmatprep.subr.mxu0 0.0
    %153 = vmatpush1.msra.mxu0 %v131
    %154 = vmatprep.subr.mxu0 0.0
    %155 = vmatpush1.msra.mxu0 %v132
    %156 = vmatprep.subr.mxu0 0.0
    %157 = vmatpush1.msra.mxu0 %v133
    %158 = vmatprep.subr.mxu0 0.0
    %159 = vmatpush1.msra.mxu0 %v134
    %160 = vmatprep.subr.mxu0 0.0
    %161 = vmatpush1.msra.mxu0 %v135
    %162 = vmatprep.subr.mxu0 0.0
    %163 = vmatpush1.msra.mxu0 %v136
    %164 = vmatprep.subr.mxu0 0.0
    %165 = vmatpush1.msra.mxu0 %v137
    %166 = vmatprep.subr.mxu0 0.0
    %167 = vmatpush1.msra.mxu0 %v138
    %168 = vmatprep.subr.mxu0 0.0
    %169 = vmatpush1.msra.mxu0 %v139
    %170 = vmatprep.subr.mxu0 0.0
    %171 = vmatpush1.msra.mxu0 %v140
    %172 = vmatprep.subr.mxu0 0.0
    %173 = vmatpush1.msra.mxu0 %v141
    %174 = vmatprep.subr.mxu0 0.0
    %175 = vmatpush1.msra.mxu0 %v142
    %176 = vmatprep.subr.mxu0 0.0
    %177 = vmatpush1.msra.mxu0 %v143
    %178 = vmatprep.subr.mxu0 0.0
    %179 = vmatpush1.msra.mxu0 %v144
    %180 = vmatprep.subr.mxu0 0.0
    %181 = vmatpush1.msra.mxu0 %v145
    %182 = vmatprep.subr.mxu0 0.0
    %183 = vmatpush1.msra.mxu0 %v146
    %184 = vmatprep.subr.mxu0 0.0
    %185 = vmatpush1.msra.mxu0 0.0
    %186 = vmatprep.subr.mxu0 0.0
    %187 = vmatpush1.msra.mxu0 0.0
    %188 = vmatprep.subr.mxu0 0.0
    %189 = vmatpush1.msra.mxu0 0.0
    %190 = vmatprep.subr.mxu0 0.0
    %191 = vmatpush1.msra.mxu0 0.0
    %192 = vmatprep.subr.mxu0 0.0
    %193 = vmatpush1.msra.mxu0 0.0
    %194 = vmatprep.subr.mxu0 0.0
    %195 = vmatpush1.msra.mxu0 0.0
    %196 = vmatprep.subr.mxu0 0.0
    %197 = vmatpush1.msra.mxu0 0.0
    %198 = vmatprep.subr.mxu0 0.0
    %199 = vmatpush1.msra.mxu0 0.0
    %200 = vmatprep.subr.mxu0 0.0
    %201 = vmatpush1.msra.mxu0 0.0
    %202 = vmatprep.subr.mxu0 0.0
    %203 = vmatpush1.msra.mxu0 0.0
    %204 = vmatprep.subr.mxu0 0.0
    %205 = vmatpush1.msra.mxu0 0.0
    %206 = vmatprep.subr.mxu0 0.0
    %207 = vmatpush1.msra.mxu0 0.0
    %208 = vmatprep.subr.mxu0 0.0
    %209 = vmatpush1.msra.mxu0 0.0
    %210 = vmatprep.subr.mxu0 0.0
    %211 = vmatpush1.msra.mxu0 0.0
    %212 = vmatprep.subr.mxu0 0.0
    %213 = vmatpush1.msra.mxu0 0.0
    %214 = vmatprep.subr.mxu0 0.0
    %215 = vmatpush1.msra.mxu0 0.0
    %216 = vmatprep.mubr.f32.mxu0 0.0
    %217 = vmatmul.mubr.f32.gmra.mrb[0].mxu0 %v130
    %v218 = vpop.f32.mrb[0].mxu0
    %v219 = vadd.f32 %v151, %v218
    %v220 = vpop.f32.mrb[0].mxu0
    %221 = vdwg.mxu0
    %v222 = vmax.f32 %v219, 0.0
    %v223 = vld [vmem:[#allocation5 + $0x140] sm:$0xff]
    %v224 = vld [vmem:[#allocation5 + $0x148] sm:$0xff]
    %v225 = vld [vmem:[#allocation5 + $0x150] sm:$0xff]
    %v226 = vld [vmem:[#allocation5 + $0x158] sm:$0xff]
    %v227 = vld [vmem:[#allocation5 + $0x160] sm:$0xff]
    %v228 = vld [vmem:[#allocation5 + $0x168] sm:$0xff]
    %v229 = vld [vmem:[#allocation5 + $0x170] sm:$0xff]
    %v230 = vld [vmem:[#allocation5 + $0x178] sm:$0xff]
    %v231 = vld [vmem:[#allocation5 + $0x180] sm:$0xff]
    %v232 = vld [vmem:[#allocation5 + $0x188] sm:$0xff]
    %v233 = vld [vmem:[#allocation5 + $0x190] sm:$0xff]
    %v234 = vld [vmem:[#allocation5 + $0x198] sm:$0xff]
    %v235 = vld [vmem:[#allocation5 + $0x1a0] sm:$0xff]
    %v236 = vld [vmem:[#allocation5 + $0x1a8] sm:$0xff]
    %v237 = vld [vmem:[#allocation5 + $0x1b0] sm:$0xff]
    %v238 = vld [vmem:[#allocation5 + $0x1b8] sm:$0xff]
    %v239 = vld [vmem:[#allocation5 + $0x1c0] sm:$0x1]
    %v240 = vlaneseq
    %v241 = vshrl.u32 %v240, 7
    %v242 = vsub.s32 0, %v241
    %v243 = vrot.slane %v239, %v242
    %244 = vmatprep.subr.mxu0 0.0
    %245 = vmatpush1.msra.mxu0 %v223
    %246 = vmatprep.subr.mxu0 0.0
    %247 = vmatpush1.msra.mxu0 %v224
    %248 = vmatprep.subr.mxu0 0.0
    %249 = vmatpush1.msra.mxu0 %v225
    %250 = vmatprep.subr.mxu0 0.0
    %251 = vmatpush1.msra.mxu0 %v226
    %252 = vmatprep.subr.mxu0 0.0
    %253 = vmatpush1.msra.mxu0 %v227
    %254 = vmatprep.subr.mxu0 0.0
    %255 = vmatpush1.msra.mxu0 %v228
    %256 = vmatprep.subr.mxu0 0.0
    %257 = vmatpush1.msra.mxu0 %v229
    %258 = vmatprep.subr.mxu0 0.0
    %259 = vmatpush1.msra.mxu0 %v230
    %260 = vmatprep.subr.mxu0 0.0
    %261 = vmatpush1.msra.mxu0 %v231
    %262 = vmatprep.subr.mxu0 0.0
    %263 = vmatpush1.msra.mxu0 %v232
    %264 = vmatprep.subr.mxu0 0.0
    %265 = vmatpush1.msra.mxu0 %v233
    %266 = vmatprep.subr.mxu0 0.0
    %267 = vmatpush1.msra.mxu0 %v234
    %268 = vmatprep.subr.mxu0 0.0
    %269 = vmatpush1.msra.mxu0 %v235
    %270 = vmatprep.subr.mxu0 0.0
    %271 = vmatpush1.msra.mxu0 %v236
    %272 = vmatprep.subr.mxu0 0.0
    %273 = vmatpush1.msra.mxu0 %v237
    %274 = vmatprep.subr.mxu0 0.0
    %275 = vmatpush1.msra.mxu0 %v238
    %276 = vmatprep.subr.mxu0 0.0
    %277 = vmatpush1.msra.mxu0 0.0
    %278 = vmatprep.subr.mxu0 0.0
    %279 = vmatpush1.msra.mxu0 0.0
    %280 = vmatprep.subr.mxu0 0.0
    %281 = vmatpush1.msra.mxu0 0.0
    %282 = vmatprep.subr.mxu0 0.0
    %283 = vmatpush1.msra.mxu0 0.0
    %284 = vmatprep.subr.mxu0 0.0
    %285 = vmatpush1.msra.mxu0 0.0
    %286 = vmatprep.subr.mxu0 0.0
    %287 = vmatpush1.msra.mxu0 0.0
    %288 = vmatprep.subr.mxu0 0.0
    %289 = vmatpush1.msra.mxu0 0.0
    %290 = vmatprep.subr.mxu0 0.0
    %291 = vmatpush1.msra.mxu0 0.0
    %292 = vmatprep.subr.mxu0 0.0
    %293 = vmatpush1.msra.mxu0 0.0
    %294 = vmatprep.subr.mxu0 0.0
    %295 = vmatpush1.msra.mxu0 0.0
    %296 = vmatprep.subr.mxu0 0.0
    %297 = vmatpush1.msra.mxu0 0.0
    %298 = vmatprep.subr.mxu0 0.0
    %299 = vmatpush1.msra.mxu0 0.0
    %300 = vmatprep.subr.mxu0 0.0
    %301 = vmatpush1.msra.mxu0 0.0
    %302 = vmatprep.subr.mxu0 0.0
    %303 = vmatpush1.msra.mxu0 0.0
    %304 = vmatprep.subr.mxu0 0.0
    %305 = vmatpush1.msra.mxu0 0.0
    %306 = vmatprep.subr.mxu0 0.0
    %307 = vmatpush1.msra.mxu0 0.0
    %308 = vmatprep.mubr.f32.mxu0 0.0
    %309 = vmatmul.mubr.f32.gmra.mrb[0].mxu0 %v222
    %v310 = vpop.f32.mrb[0].mxu0
    %v311 = vadd.f32 %v243, %v310
    %v312 = vpop.f32.mrb[0].mxu0
    %313 = vdwg.mxu0
    %v314 = vtanh.pop %v311
    %v315 = vmul.f32 %v314, 2.0
    %316 = vst [vmem:[#allocation7] sm:$0xff] %v315
    // Predicated region
    $region18: #{tpu_custom_call.1} parent=1 // pred_check
      _
    $region19: #{tpu_custom_call.1} parent=1 // pred_check_branch
      %318 = sbr.rel (0) target = $region21
    $region20: #{tpu_custom_call.1} parent=1 // pred_region
      %s320 = ssub.s32 128, 128
      %321 = vsyncadd [#allocation4], %s320
      %s323 = sshll.u32 [#allocation7], 4
      %s324 = int_to_ptr.vmem [resolvable:$true] %s323
      %326 = dma.vmem_to_hbm [thread:$0]  %s324, 128, %s2, [#allocation4]
    $region21: #{tpu_custom_call.1} parent=1 // pred_fallthru
      _
    // Predicated region
    $region22: #{tpu_custom_call.1} parent=1 // pred_check
      _
    $region23: #{tpu_custom_call.1} parent=1 // pred_check_branch
      %328 = sbr.rel (0) target = $region25
    $region24: #{tpu_custom_call.1} parent=1 // pred_region
      %329 = dma.done [#allocation4], 128
    $region25: #{tpu_custom_call.1} parent=1 // pred_fallthru
      _
    %330 = vsyncpa [#allocation3], 1
    %331 = vsyncpa [#allocation6], 1
    %332 = vsyncpa [#allocation4], 1

</llo_original>
